<compile_context>
chip_gen: v6e
topology: v6e:2x2x1
jax: 0.10.0
libtpu: 0.0.40
codegen_flags: <defaults>
</compile_context>

<pallas_src>
import jax
import jax.numpy as jnp
from jax.experimental import pallas as pl
from jax.experimental.pallas import tpu as pltpu


# ------------------------------ kernels ------------------------------------ #
def _copy_kernel(x_ref, oe_ref, oo_ref):
    # with_conv=False: nearest x2 -> even and odd phases are both x.
    x = x_ref[0]
    oe_ref[0] = x
    oo_ref[0] = x


def _make_conv_kernel(TT, HL, has_halo):
    def kernel(*refs):
        if has_halo:
            x_ref, prev_ref, next_ref, w_ref, b_ref, oe_ref, oo_ref = refs
        else:
            x_ref, w_ref, b_ref, oe_ref, oo_ref = refs

        t = pl.program_id(1)
        nt = pl.num_programs(1)

        x = x_ref[0]                                    # (C, TT), native dtype
        C = x.shape[0]

        if has_halo:
            prev_col = prev_ref[0, :, HL - 1:HL]        # x[:, t*TT - 1]
            next_col = next_ref[0, :, 0:1]              # x[:, t*TT + TT]
            # Global sequence edges -> conv zero padding.
            prev_col = jnp.where(t == 0, jnp.zeros_like(prev_col), prev_col)
            next_col = jnp.where(t == nt - 1, jnp.zeros_like(next_col), next_col)
        else:
            prev_col = jnp.zeros((C, 1), x.dtype)
            next_col = jnp.zeros((C, 1), x.dtype)

        # +-1 shifts along the time (lane) axis -- cheap single-lane shifts.
        x_prev = jnp.concatenate([prev_col, x[:, :TT - 1]], axis=1)
        x_next = jnp.concatenate([x[:, 1:], next_col], axis=1)

        xb = x.astype(jnp.bfloat16)
        xpb = x_prev.astype(jnp.bfloat16)
        xnb = x_next.astype(jnp.bfloat16)

        # Split accumulating MXU matmuls (no zero-padded fused weight):
        #   even = W0 x[t-1] + (W1+W2) x[t] ; odd = (W0+W1) x[t] + W2 x[t+1]
        even = jnp.dot(w_ref[0], xpb, preferred_element_type=jnp.float32)
        even = even + jnp.dot(w_ref[1], xb, preferred_element_type=jnp.float32)
        odd = jnp.dot(w_ref[2], xb, preferred_element_type=jnp.float32)
        odd = odd + jnp.dot(w_ref[3], xnb, preferred_element_type=jnp.float32)

        b = b_ref[...]                                  # (C, 1) f32
        oe_ref[0] = (even + b).astype(oe_ref.dtype)
        oo_ref[0] = (odd + b).astype(oo_ref.dtype)

    return kernel


# ------------------------------ wrapper ------------------------------------ #
def _pick_time_tile(T, C, itemsize, vmem_budget, prefer_split):
    """Largest time tile (multiple of 128 dividing T) whose working set fits."""
    if T % 128 != 0:
        return T  # TODO(synk): masked remainder path for ragged T; full-T tile.

    def footprint(tt):
        x_b = 2 * tt * C * itemsize            # double-buffered input tile
        halo_b = 2 * 2 * 128 * C * itemsize    # two 128-lane halo blocks, 2x buf
        out_b = 2 * 2 * tt * C * itemsize      # two outputs, 2x buffered
        w_b = 4 * C * C * 2 + C * 4            # single-buffered weights + bias
        tmp_b = 6 * tt * C * 4                 # shifted copies / f32 accumulators
        return x_b + halo_b + out_b + w_b + tmp_b

    # Keep >= 2 time steps when there is no batch parallelism (v7x megacore).
    max_tt = T // 2 if (prefer_split and T % 256 == 0) else T
    best = 128
    tt = 128
    while tt <= max_tt:
        if T % tt == 0 and footprint(tt) <= vmem_budget:
            best = tt
        tt += 128
    return best


def upsample_pallas(x, conv_w=None, conv_b=None, *, with_conv=True):
    """x: (B, C, T) NCT.  conv_w: (C, C, 3) [out, in, k], conv_b: (C,).
    Returns (B, C, 2T)."""
    B, C, T = x.shape

    try:
        vmem_cap = pltpu.get_tpu_info().vmem_capacity_bytes
    except Exception:
        vmem_cap = 64 * 2 ** 20
    # ~48 MiB on v7x (64 MiB physical VMEM), ~96 MiB on v5e/v6e (128 MiB).
    vmem_limit = int(min(0.75 * vmem_cap, 112 * 2 ** 20))
    tile_budget = int(0.6 * vmem_limit)

    TT = _pick_time_tile(T, C, x.dtype.itemsize, tile_budget,
                         prefer_split=(B == 1))
    nT = T // TT
    has_halo = TT < T          # tiled path requires T % 128 == 0 (by picker)

    grid = (B, nT)
    x_spec = pl.BlockSpec((1, C, TT), lambda b, t: (b, 0, t))
    out_spec = pl.BlockSpec((1, C, TT), lambda b, t: (b, 0, t))
    out_shape = (jax.ShapeDtypeStruct((B, C, T), x.dtype),
                 jax.ShapeDtypeStruct((B, C, T), x.dtype))

    cparams = pltpu.CompilerParams(
        dimension_semantics=("parallel", "parallel"),
        vmem_limit_bytes=vmem_limit)

    if not with_conv:
        even, odd = pl.pallas_call(
            _copy_kernel,
            out_shape=out_shape,
            grid=grid,
            in_specs=[x_spec],
            out_specs=(out_spec, out_spec),
            compiler_params=cparams,
        )(x)
    else:
        # Phase-merged (Cout, Cin) weights in bf16; bias stays f32.
        w = conv_w.astype(jnp.float32)
        w0, w1, w2 = w[:, :, 0], w[:, :, 1], w[:, :, 2]
        wk = jnp.stack([w0, w1 + w2, w0 + w1, w2], axis=0).astype(jnp.bfloat16)
        bk = conv_b.reshape(C, 1).astype(jnp.float32)

        # Grid-invariant operands: single-buffer to save VMEM.
        w_spec = pl.BlockSpec((4, C, C), lambda b, t: (0, 0, 0),
                              pipeline_mode=pl.Buffered(1))
        b_spec = pl.BlockSpec((C, 1), lambda b, t: (0, 0),
                              pipeline_mode=pl.Buffered(1))

        if has_halo:
            k = TT // 128
            nHL = T // 128
            prev_spec = pl.BlockSpec(
                (1, C, 128), lambda b, t: (b, 0, jnp.maximum(t * k - 1, 0)))
            next_spec = pl.BlockSpec(
                (1, C, 128), lambda b, t: (b, 0, jnp.minimum(t * k + k, nHL - 1)))
            in_specs = [x_spec, prev_spec, next_spec, w_spec, b_spec]
            args = (x, x, x, wk, bk)
        else:
            in_specs = [x_spec, w_spec, b_spec]
            args = (x, wk, bk)

        even, odd = pl.pallas_call(
            _make_conv_kernel(TT, 128, has_halo),
            out_shape=out_shape,
            grid=grid,
            in_specs=in_specs,
            out_specs=(out_spec, out_spec),
            compiler_params=cparams,
        )(*args)

    # Interleave phases: out[..., 2t] = even[..., t], out[..., 2t+1] = odd[..., t].
    return jnp.stack([even, odd], axis=-1).reshape(B, C, 2 * T)


# --------------------------- pure-JAX reference ----------------------------- #
def ref_upsample(x, conv_w=None, conv_b=None, *, with_conv=True):
    y = jnp.repeat(x, 2, axis=-1)                          # nearest, scale 2
    if with_conv:
        y = jax.lax.conv_general_dilated(
            y, conv_w, window_strides=(1,), padding=[(1, 1)],
            dimension_numbers=("NCH", "OIH", "NCH"),
            precision=jax.lax.Precision.HIGHEST)
        y = y + conv_b[None, :, None]
    return y


# ---------------------------------- main ------------------------------------ #
if __name__ == "__main__":
    B, C, T = 2, 8, 16
    key = jax.random.PRNGKey(0)
    kx, kw, kb = jax.random.split(key, 3)
    x = jax.random.normal(kx, (B, C, T), jnp.float32)
    conv_w = 0.3 * jax.random.normal(kw, (C, C, 3), jnp.float32)   # (out, in, k)
    conv_b = 0.1 * jax.random.normal(kb, (C,), jnp.float32)

    # with_conv=True path (bf16 MXU operands, f32 accumulation -> bf16 tolerance)
    out = jax.block_until_ready(upsample_pallas(x, conv_w, conv_b, with_conv=True))
    ref = ref_upsample(x, conv_w, conv_b, with_conv=True)
    assert out.shape == (B, C, 2 * T)
    assert jnp.allclose(out, ref, atol=3e-2, rtol=3e-2), \
        float(jnp.max(jnp.abs(out - ref)))

    # with_conv=False path (pure nearest x2) -- exact
    out2 = jax.block_until_ready(upsample_pallas(x, with_conv=False))
    ref2 = ref_upsample(x, with_conv=False)
    assert out2.shape == (B, C, 2 * T)
    assert jnp.allclose(out2, ref2, atol=1e-6, rtol=1e-6), \
        float(jnp.max(jnp.abs(out2 - ref2)))

    print("KERNEL_OK")
</pallas_src>

<mosaic_0001>
module attributes {stable_mosaic.version = 11 : i64} {
  func.func @kernel(%arg0: i32, %arg1: i32, %arg2: memref<1x8x16xf32, #tpu.memory_space<vmem>>, %arg3: memref<4x8x8xbf16, #tpu.memory_space<vmem>>, %arg4: memref<8x1xf32, #tpu.memory_space<vmem>>, %arg5: memref<1x8x16xf32, #tpu.memory_space<vmem>>, %arg6: memref<1x8x16xf32, #tpu.memory_space<vmem>>) attributes {dimension_semantics = [#tpu.dimension_semantics<parallel>, #tpu.dimension_semantics<parallel>], iteration_bounds = array<i64: 2, 1>, scalar_prefetch = 0 : i64, scratch_operands = 0 : i64, tpu.core_type = #tpu.core_type<tc>, window_params = [{transform_indices = @transform_0, window_bounds = array<i64: 1, 8, 16>}, {pipeline_mode = #tpu.pipeline_mode<synchronous>, transform_indices = @transform_1, window_bounds = array<i64: 4, 8, 8>}, {pipeline_mode = #tpu.pipeline_mode<synchronous>, transform_indices = @transform_2, window_bounds = array<i64: 8, 1>}, {transform_indices = @transform_3, window_bounds = array<i64: 1, 8, 16>}, {transform_indices = @transform_4, window_bounds = array<i64: 1, 8, 16>}]} {
    %c0 = arith.constant 0 : index
    %c0_0 = arith.constant 0 : index
    %c0_1 = arith.constant 0 : index
    %0 = vector.load %arg2[%c0, %c0_0, %c0_1] : memref<1x8x16xf32, #tpu.memory_space<vmem>>, vector<1x8x16xf32>
    %1 = vector.shape_cast %0 : vector<1x8x16xf32> to vector<8x16xf32>
    %cst = arith.constant 0.000000e+00 : f32
    %2 = vector.broadcast %cst : f32 to vector<8x1xf32>
    %cst_2 = arith.constant 0.000000e+00 : f32
    %3 = vector.broadcast %cst_2 : f32 to vector<8x1xf32>
    %4 = vector.extract_strided_slice %1 {offsets = [0, 0], sizes = [8, 15], strides = [1, 1]} : vector<8x16xf32> to vector<8x15xf32>
    %5 = tpu.concatenate %2, %4 in 1 : vector<8x1xf32>, vector<8x15xf32> -> vector<8x16xf32>
    %6 = vector.extract_strided_slice %1 {offsets = [0, 1], sizes = [8, 15], strides = [1, 1]} : vector<8x16xf32> to vector<8x15xf32>
    %7 = tpu.concatenate %6, %3 in 1 : vector<8x15xf32>, vector<8x1xf32> -> vector<8x16xf32>
    %8 = arith.truncf %1 : vector<8x16xf32> to vector<8x16xbf16>
    %9 = arith.truncf %5 : vector<8x16xf32> to vector<8x16xbf16>
    %10 = arith.truncf %7 : vector<8x16xf32> to vector<8x16xbf16>
    %c0_3 = arith.constant 0 : index
    %c0_4 = arith.constant 0 : index
    %c0_5 = arith.constant 0 : index
    %11 = vector.load %arg3[%c0_3, %c0_4, %c0_5] : memref<4x8x8xbf16, #tpu.memory_space<vmem>>, vector<1x8x8xbf16>
    %12 = vector.shape_cast %11 : vector<1x8x8xbf16> to vector<8x8xbf16>
    %cst_6 = arith.constant dense<0.000000e+00> : vector<8x16xf32>
    %13 = tpu.matmul %12, %9, %cst_6 {dimension_numbers = #tpu.dot_dimension_numbers<[1], [0], [0], [1], [0, 0, 1, 1], [], []>} : vector<8x8xbf16>, vector<8x16xbf16>, vector<8x16xf32> -> vector<8x16xf32>
    %c1 = arith.constant 1 : index
    %c0_7 = arith.constant 0 : index
    %c0_8 = arith.constant 0 : index
    %14 = vector.load %arg3[%c1, %c0_7, %c0_8] : memref<4x8x8xbf16, #tpu.memory_space<vmem>>, vector<1x8x8xbf16>
    %15 = vector.shape_cast %14 : vector<1x8x8xbf16> to vector<8x8xbf16>
    %cst_9 = arith.constant dense<0.000000e+00> : vector<8x16xf32>
    %16 = tpu.matmul %15, %8, %cst_9 {dimension_numbers = #tpu.dot_dimension_numbers<[1], [0], [0], [1], [0, 0, 1, 1], [], []>} : vector<8x8xbf16>, vector<8x16xbf16>, vector<8x16xf32> -> vector<8x16xf32>
    %17 = arith.addf %13, %16 : vector<8x16xf32>
    %c2 = arith.constant 2 : index
    %c0_10 = arith.constant 0 : index
    %c0_11 = arith.constant 0 : index
    %18 = vector.load %arg3[%c2, %c0_10, %c0_11] : memref<4x8x8xbf16, #tpu.memory_space<vmem>>, vector<1x8x8xbf16>
    %19 = vector.shape_cast %18 : vector<1x8x8xbf16> to vector<8x8xbf16>
    %cst_12 = arith.constant dense<0.000000e+00> : vector<8x16xf32>
    %20 = tpu.matmul %19, %8, %cst_12 {dimension_numbers = #tpu.dot_dimension_numbers<[1], [0], [0], [1], [0, 0, 1, 1], [], []>} : vector<8x8xbf16>, vector<8x16xbf16>, vector<8x16xf32> -> vector<8x16xf32>
    %c3 = arith.constant 3 : index
    %c0_13 = arith.constant 0 : index
    %c0_14 = arith.constant 0 : index
    %21 = vector.load %arg3[%c3, %c0_13, %c0_14] : memref<4x8x8xbf16, #tpu.memory_space<vmem>>, vector<1x8x8xbf16>
    %22 = vector.shape_cast %21 : vector<1x8x8xbf16> to vector<8x8xbf16>
    %cst_15 = arith.constant dense<0.000000e+00> : vector<8x16xf32>
    %23 = tpu.matmul %22, %10, %cst_15 {dimension_numbers = #tpu.dot_dimension_numbers<[1], [0], [0], [1], [0, 0, 1, 1], [], []>} : vector<8x8xbf16>, vector<8x16xbf16>, vector<8x16xf32> -> vector<8x16xf32>
    %24 = arith.addf %20, %23 : vector<8x16xf32>
    %c0_16 = arith.constant 0 : index
    %c0_17 = arith.constant 0 : index
    %25 = vector.load %arg4[%c0_16, %c0_17] : memref<8x1xf32, #tpu.memory_space<vmem>>, vector<8x1xf32>
    %26 = vector.broadcast %25 : vector<8x1xf32> to vector<8x16xf32>
    %27 = arith.addf %17, %26 : vector<8x16xf32>
    %c0_18 = arith.constant 0 : index
    %c0_19 = arith.constant 0 : index
    %c0_20 = arith.constant 0 : index
    %28 = vector.load %arg5[%c0_18, %c0_19, %c0_20] : memref<1x8x16xf32, #tpu.memory_space<vmem>>, vector<1x8x16xf32>
    %29 = vector.shape_cast %28 : vector<1x8x16xf32> to vector<8x16xf32>
    %30 = vector.shape_cast %27 : vector<8x16xf32> to vector<1x8x16xf32>
    tpu.vector_store %arg5[%c0_18, %c0_19, %c0_20], %30 {strides = array<i32>} : memref<1x8x16xf32, #tpu.memory_space<vmem>>, vector<1x8x16xf32>,
    %31 = vector.broadcast %25 : vector<8x1xf32> to vector<8x16xf32>
    %32 = arith.addf %24, %31 : vector<8x16xf32>
    %c0_21 = arith.constant 0 : index
    %c0_22 = arith.constant 0 : index
    %c0_23 = arith.constant 0 : index
    %33 = vector.load %arg6[%c0_21, %c0_22, %c0_23] : memref<1x8x16xf32, #tpu.memory_space<vmem>>, vector<1x8x16xf32>
    %34 = vector.shape_cast %33 : vector<1x8x16xf32> to vector<8x16xf32>
    %35 = vector.shape_cast %32 : vector<8x16xf32> to vector<1x8x16xf32>
    tpu.vector_store %arg6[%c0_21, %c0_22, %c0_23], %35 {strides = array<i32>} : memref<1x8x16xf32, #tpu.memory_space<vmem>>, vector<1x8x16xf32>,
    return
  }
  func.func @transform_0(%arg0: i32, %arg1: i32) -> (i32, i32, i32) {
    %c0_i32 = arith.constant 0 : i32
    %c0_i32_0 = arith.constant 0 : i32
    return %arg0, %c0_i32, %arg1 : i32, i32, i32
  }
  func.func @transform_1(%arg0: i32, %arg1: i32) -> (i32, i32, i32) {
    %c0_i32 = arith.constant 0 : i32
    %c0_i32_0 = arith.constant 0 : i32
    %c0_i32_1 = arith.constant 0 : i32
    %c0_i32_2 = arith.constant 0 : i32
    return %c0_i32, %c0_i32_0, %c0_i32_1 : i32, i32, i32
  }
  func.func @transform_2(%arg0: i32, %arg1: i32) -> (i32, i32) {
    %c0_i32 = arith.constant 0 : i32
    %c0_i32_0 = arith.constant 0 : i32
    %c0_i32_1 = arith.constant 0 : i32
    return %c0_i32, %c0_i32_0 : i32, i32
  }
  func.func @transform_3(%arg0: i32, %arg1: i32) -> (i32, i32, i32) {
    %c0_i32 = arith.constant 0 : i32
    %c0_i32_0 = arith.constant 0 : i32
    return %arg0, %c0_i32, %arg1 : i32, i32, i32
  }
  func.func @transform_4(%arg0: i32, %arg1: i32) -> (i32, i32, i32) {
    %c0_i32 = arith.constant 0 : i32
    %c0_i32_0 = arith.constant 0 : i32
    return %arg0, %c0_i32, %arg1 : i32, i32, i32
  }
}

</mosaic_0001>

<llo_original>
// kernel: tpu_custom_call.1
$region0: #{tpu_custom_call.1}
  #allocation0 [shape = 'u32[]', space=smem, size = 0x4, offset = 0x4, fixed_abs, tag = 'smem constant byte address 0x4 - core index']
  #allocation1 [shape = 'u32[144,128]{1,0:T(1,128)}', space=vmem, size = 0x12000, scoped, tag = 'internal scratch']
  %s0 = inlined_call_operand.hbm [shape: f32[2,8,16], index: 0, kind: input, shape index: {}]
  %s1 = inlined_call_operand.hbm [shape: bf16[4,8,8], index: 1, kind: input, shape index: {}]
  %s2 = inlined_call_operand.vmem [shape: f32[8,1], index: 2, kind: input, shape index: {}]
  %s3 = inlined_call_operand.hbm [shape: f32[2,8,16], index: 3, kind: output, shape index: {0}]
  %s4 = inlined_call_operand.hbm [shape: f32[2,8,16], index: 4, kind: output, shape index: {1}]
  %5 = xla_tuple %s3, %s4
  %s6 = sld [smem:[#allocation0]]
  $region61: #{tpu_custom_call.1} parent=0
    _
  %s8 = ssub.s32 1, %s6
  %s9 = scalar_select 0, %s8, %s6
  $region1: #{tpu_custom_call.1} parent=0
    #allocation2 [shape = 'u8[8192]{0}', space=vmem, size = 0x2000, scoped, tag = 'input window, operand 0']
    #allocation3 [shape = 's32[2]{0}', space=sflag, size = 0x8, scoped, tag = 'scoped memory for tpu_custom_call.1']
    #allocation4 [shape = 's32[2]{0}', space=sflag, size = 0x8, scoped, tag = 'scoped memory for tpu_custom_call.1']
    #allocation5 [shape = 'u8[8192]{0}', space=vmem, size = 0x2000, scoped, tag = 'input window, operand 1, single buffered']
    #allocation6 [shape = 's32[1]{0}', space=sflag, size = 0x4, scoped, tag = 'scoped memory for tpu_custom_call.1']
    #allocation7 [shape = 'u8[8192]{0}', space=vmem, size = 0x2000, scoped, tag = 'output window, operand 0']
    #allocation8 [shape = 'u8[8192]{0}', space=vmem, size = 0x2000, scoped, tag = 'output window, operand 1']
    #allocation9 [shape = 's32[2]{0}', space=sflag, size = 0x8, scoped, tag = 'scoped memory for tpu_custom_call.1']
    %10 = vsyncpa [#allocation3], 0
    %s11 = scalar_lea.sflag [#allocation3], 1
    %12 = vsyncpa %s11, 0
    %13 = vsyncpa [#allocation6], 0
    %14 = vsyncpa [#allocation4], 0
    %s15 = scalar_lea.sflag [#allocation4], 1
    %16 = vsyncpa %s15, 0
    %17 = vsyncpa [#allocation9], 0
    %s18 = scalar_lea.sflag [#allocation9], 1
    %19 = vsyncpa %s18, 0
    loop: start=0, step=1, limit=4
    $region2: #{tpu_custom_call.1} parent=1 // loop_pre_header
      _
    $region3: #{tpu_custom_call.1} parent=1 // loop_header
      %s21 = sphi 0, %s25
      %p22 = scmp.ge.s32.totalorder %s21, 4
      %s28 = sphi 0, %s40
      %s29 = sphi 0, %s36
      %s30 = sphi 0, %s28
      %s31 = sphi 0, %s29
      %s32 = sphi 0, %s30
      %s33 = sphi 0, %s31
      %s45 = sphi 0, %s47
      %s48 = sphi 0, %s45
      %s49 = sphi 0, %s48
      %s65 = sphi 0, %s49
      %s69 = sphi 0, %s69
      %s71 = sphi 0, %s69
      %s72 = sphi 0, %s71
      %s86 = sphi 0, %s72
      %s90 = sphi 0, %s90
      %s92 = sphi 0, %s90
      %s93 = sphi 0, %s92
      %s107 = sphi 0, %s93
      %s115 = sphi 0, %s117
      %s118 = sphi 0, %s115
      %s119 = sphi 0, %s118
      %s135 = sphi 0, %s119
      %s143 = sphi 0, %s145
      %s146 = sphi 0, %s143
      %s147 = sphi 0, %s146
      %s163 = sphi 0, %s147
    $region4: #{tpu_custom_call.1} parent=1 // loop_header_branch
      %24 = sbr.rel (%p22) target = $region8
    $region5: #{tpu_custom_call.1} parent=1 // loop_body
      %s26 = ssub.s32 %s21, 1
      %s27 = ssub.s32 %s21, 2
      %s34 = sadd.s32 1, %s29
      %p35 = scmp.ge.s32.totalorder %s34, 1
      %s36 = scalar_select %p35, 0, %s34
      %s37 = sadd.s32 1, %s28
      %s38 = scalar_select %p35, %s37, %s28
      %p39 = scmp.ge.s32.totalorder %s38, 2
      %s40 = scalar_select %p39, 0, %s38
      %s41 = ssub.s32 %s28, %s40
      %s42 = ssub.s32 %s29, %s36
      %s43 = sor.u32 %s41, %s42
      %p44 = scmp.eq.s32.totalorder %s43, 0
      %s46 = sadd.s32 %s45, 1
      %s47 = scalar_select %p44, %s45, %s46
      %p50 = pneg %p44
      %p51 = scmp.eq.s32.totalorder %s21, 1
      %p52 = por %p50, %p51
      %p53 = scmp.ne.s32.totalorder %s45, %s48
      %p54 = scmp.eq.s32.totalorder %s21, 0
      %p55 = por %p53, %p54
      %p56 = scmp.ne.s32.totalorder %s45, %s48
      %p57 = scmp.eq.s32.totalorder %s26, 1
      %p58 = por %p56, %p57
      %p59 = scmp.ne.s32.totalorder %s48, %s49
      %p60 = scmp.eq.s32.totalorder %s26, 0
      %p61 = por %p59, %p60
      %p62 = scmp.ne.s32.totalorder %s48, %s49
      %p63 = scmp.eq.s32.totalorder %s27, 1
      %p64 = por %p62, %p63
      %p66 = scmp.ne.s32.totalorder %s49, %s65
      %p67 = scmp.eq.s32.totalorder %s27, 0
      %p68 = por %p66, %p67
      %s70 = sadd.s32 %s69, 1
      %p73 = scmp.eq.s32.totalorder %s21, 1
      %p74 = scmp.ne.s32.totalorder %s69, %s71
      %p75 = scmp.eq.s32.totalorder %s21, 0
      %p76 = por %p74, %p75
      %p77 = scmp.ne.s32.totalorder %s69, %s71
      %p78 = scmp.eq.s32.totalorder %s26, 1
      %p79 = por %p77, %p78
      %p80 = scmp.ne.s32.totalorder %s71, %s72
      %p81 = scmp.eq.s32.totalorder %s26, 0
      %p82 = por %p80, %p81
      %p83 = scmp.ne.s32.totalorder %s71, %s72
      %p84 = scmp.eq.s32.totalorder %s27, 1
      %p85 = por %p83, %p84
      %p87 = scmp.ne.s32.totalorder %s72, %s86
      %p88 = scmp.eq.s32.totalorder %s27, 0
      %p89 = por %p87, %p88
      %s91 = sadd.s32 %s90, 1
      %p94 = scmp.eq.s32.totalorder %s21, 1
      %p95 = scmp.ne.s32.totalorder %s90, %s92
      %p96 = scmp.eq.s32.totalorder %s21, 0
      %p97 = por %p95, %p96
      %p98 = scmp.ne.s32.totalorder %s90, %s92
      %p99 = scmp.eq.s32.totalorder %s26, 1
      %p100 = por %p98, %p99
      %p101 = scmp.ne.s32.totalorder %s92, %s93
      %p102 = scmp.eq.s32.totalorder %s26, 0
      %p103 = por %p101, %p102
      %p104 = scmp.ne.s32.totalorder %s92, %s93
      %p105 = scmp.eq.s32.totalorder %s27, 1
      %p106 = por %p104, %p105
      %p108 = scmp.ne.s32.totalorder %s93, %s107
      %p109 = scmp.eq.s32.totalorder %s27, 0
      %p110 = por %p108, %p109
      %s111 = ssub.s32 %s28, %s40
      %s112 = ssub.s32 %s29, %s36
      %s113 = sor.u32 %s111, %s112
      %p114 = scmp.eq.s32.totalorder %s113, 0
      %s116 = sadd.s32 %s115, 1
      %s117 = scalar_select %p114, %s115, %s116
      %p120 = pneg %p114
      %p121 = scmp.eq.s32.totalorder %s21, 1
      %p122 = por %p120, %p121
      %p123 = scmp.ne.s32.totalorder %s115, %s118
      %p124 = scmp.eq.s32.totalorder %s21, 0
      %p125 = por %p123, %p124
      %p126 = scmp.ne.s32.totalorder %s115, %s118
      %p127 = scmp.eq.s32.totalorder %s26, 1
      %p128 = por %p126, %p127
      %p129 = scmp.ne.s32.totalorder %s118, %s119
      %p130 = scmp.eq.s32.totalorder %s26, 0
      %p131 = por %p129, %p130
      %p132 = scmp.ne.s32.totalorder %s118, %s119
      %p133 = scmp.eq.s32.totalorder %s27, 1
      %p134 = por %p132, %p133
      %p136 = scmp.ne.s32.totalorder %s119, %s135
      %p137 = scmp.eq.s32.totalorder %s27, 0
      %p138 = por %p136, %p137
      %s139 = ssub.s32 %s28, %s40
      %s140 = ssub.s32 %s29, %s36
      %s141 = sor.u32 %s139, %s140
      %p142 = scmp.eq.s32.totalorder %s141, 0
      %s144 = sadd.s32 %s143, 1
      %s145 = scalar_select %p142, %s143, %s144
      %p148 = pneg %p142
      %p149 = scmp.eq.s32.totalorder %s21, 1
      %p150 = por %p148, %p149
      %p151 = scmp.ne.s32.totalorder %s143, %s146
      %p152 = scmp.eq.s32.totalorder %s21, 0
      %p153 = por %p151, %p152
      %p154 = scmp.ne.s32.totalorder %s143, %s146
      %p155 = scmp.eq.s32.totalorder %s26, 1
      %p156 = por %p154, %p155
      %p157 = scmp.ne.s32.totalorder %s146, %s147
      %p158 = scmp.eq.s32.totalorder %s26, 0
      %p159 = por %p157, %p158
      %p160 = scmp.ne.s32.totalorder %s146, %s147
      %p161 = scmp.eq.s32.totalorder %s27, 1
      %p162 = por %p160, %p161
      %p164 = scmp.ne.s32.totalorder %s147, %s163
      %p165 = scmp.eq.s32.totalorder %s27, 0
      %p166 = por %p164, %p165
      %p167 = scmp.le.s32.totalorder 1, %s21
      %p168 = scmp.lt.s32.totalorder %s21, 3
      %p169 = pnand %p167, %p168
      %p170 = pneg %p169
      // Predicated region
      $region9: #{tpu_custom_call.1} parent=5 // pred_check
        _
      $region10: #{tpu_custom_call.1} parent=5 // pred_check_branch
        %172 = sbr.rel (%p169) target = $region12
      $region11: #{tpu_custom_call.1} parent=5 // pred_region
        %s173 = ssub.s32 %s21, 1
        // Predicated region
        $region13: #{tpu_custom_call.1} parent=11 // pred_check
          %p174 = pneg %p82
        $region14: #{tpu_custom_call.1} parent=11 // pred_check_branch
          %176 = sbr.rel (%p174) target = $region16
        $region15: #{tpu_custom_call.1} parent=11 // pred_region
          %s178 = ssub.s32 256, 256
          %179 = vsyncadd [#allocation6], %s178
          %s180 = sshll.u32 [#allocation5], 4
          %s181 = int_to_ptr.vmem [resolvable:$true] %s180
          %186 = dma.hbm_to_vmem [thread:$0]  %s1, 256, %s181, [#allocation6], 64, 64, 4
        $region16: #{tpu_custom_call.1} parent=11 // pred_fallthru
          _
        // Predicated region
        $region17: #{tpu_custom_call.1} parent=11 // pred_check
          %p187 = pneg %p103
        $region18: #{tpu_custom_call.1} parent=11 // pred_check_branch
          %189 = sbr.rel (%p187) target = $region20
        $region19: #{tpu_custom_call.1} parent=11 // pred_region
          _
        $region20: #{tpu_custom_call.1} parent=11 // pred_fallthru
          _
      $region12: #{tpu_custom_call.1} parent=5 // pred_fallthru
        _
      %p190 = scmp.lt.s32.totalorder %s21, 2
      // Predicated region
      $region21: #{tpu_custom_call.1} parent=5 // pred_check
        %p191 = pneg %p190
      $region22: #{tpu_custom_call.1} parent=5 // pred_check_branch
        %193 = sbr.rel (%p191) target = $region24
      $region23: #{tpu_custom_call.1} parent=5 // pred_region
        // Predicated region
        $region25: #{tpu_custom_call.1} parent=23 // pred_check
          %p194 = pneg %p55
        $region26: #{tpu_custom_call.1} parent=23 // pred_check_branch
          %196 = sbr.rel (%p194) target = $region28
        $region27: #{tpu_custom_call.1} parent=23 // pred_region
          %s197 = sand.u32 %s45, 1
          %s198 = scalar_lea.sflag [#allocation3], %s197
          %s199 = sand.u32 %s45, 1
          %s200 = smul.addr %s199, 8
          %s201 = scalar_lea.vmem [#allocation2], %s200
          %s203 = ssub.s32 128, 128
          %204 = vsyncadd %s198, %s203
          %s205 = sadd.s32 %s29, %s28
          %s206 = smul.addr %s205, 128
          %s207 = scalar_lea.hbm %s0, %s206
          %s209 = sshll.u32 %s201, 4
          %s210 = int_to_ptr.vmem [resolvable:$true] %s209
          %212 = dma.hbm_to_vmem [thread:$0]  %s207, 128, %s210, %s198
        $region28: #{tpu_custom_call.1} parent=23 // pred_fallthru
          _
      $region24: #{tpu_custom_call.1} parent=5 // pred_fallthru
        _
      %p213 = scmp.le.s32.totalorder 1, %s21
      %p214 = scmp.lt.s32.totalorder %s21, 3
      %p215 = pnand %p213, %p214
      %p216 = pneg %p215
      // Predicated region
      $region29: #{tpu_custom_call.1} parent=5 // pred_check
        _
      $region30: #{tpu_custom_call.1} parent=5 // pred_check_branch
        %218 = sbr.rel (%p215) target = $region32
      $region31: #{tpu_custom_call.1} parent=5 // pred_region
        %s219 = ssub.s32 %s21, 1
        %s220 = sand.u32 %s48, 1
        %s221 = scalar_lea.sflag [#allocation3], %s220
        %s222 = sand.u32 %s48, 1
        %s223 = smul.addr %s222, 8
        %s224 = scalar_lea.vmem [#allocation2], %s223
        // Predicated region
        $region33: #{tpu_custom_call.1} parent=31 // pred_check
          %p225 = pneg %p61
        $region34: #{tpu_custom_call.1} parent=31 // pred_check_branch
          %227 = sbr.rel (%p225) target = $region36
        $region35: #{tpu_custom_call.1} parent=31 // pred_region
          %228 = dma.done %s221, 128
        $region36: #{tpu_custom_call.1} parent=31 // pred_fallthru
          _
        // Predicated region
        $region37: #{tpu_custom_call.1} parent=31 // pred_check
          %p229 = pneg %p82
        $region38: #{tpu_custom_call.1} parent=31 // pred_check_branch
          %231 = sbr.rel (%p229) target = $region40
        $region39: #{tpu_custom_call.1} parent=31 // pred_region
          %232 = dma.done [#allocation6], 256
        $region40: #{tpu_custom_call.1} parent=31 // pred_fallthru
          _
        %s233 = sand.u32 %s48, 1
        %s234 = scalar_lea.sflag [#allocation3], %s233
        %s235 = sand.u32 %s48, 1
        %s236 = smul.addr %s235, 8
        %s237 = scalar_lea.vmem [#allocation2], %s236
        %p238 = pneg %p61
        %p239 = pneg %p58
        %p240 = pneg %p82
        %p241 = pneg %p79
        %p242 = pneg %p103
        %p243 = pneg %p100
        %p244 = pneg %p131
        %p245 = pneg %p128
        %s246 = sand.u32 %s118, 1
        %s247 = scalar_lea.sflag [#allocation4], %s246
        %s248 = sand.u32 %s118, 1
        %s249 = smul.addr %s248, 8
        %s250 = scalar_lea.vmem [#allocation7], %s249
        %p251 = pneg %p159
        %p252 = pneg %p156
        %s253 = sand.u32 %s146, 1
        %s254 = scalar_lea.sflag [#allocation9], %s253
        %s255 = sand.u32 %s146, 1
        %s256 = smul.addr %s255, 8
        %s257 = scalar_lea.vmem [#allocation8], %s256
        %v259 = vld [vmem:[%s224] sm:$0xff]
        %261 = vrot.lane.b32.xlu0 %v259, 1
        %v262 = vpop.permute.xlu0 %261
        %vm264 = vcmask 7168
        %v265 = vsel %vm264, 0.0, %v262
        %266 = vrot.lane.b32.xlu0 %v259, 127
        %v267 = vpop.permute.xlu0 %266
        %vm269 = vcmask 121856
        %v270 = vsel %vm269, %v267, 0.0
        %v271 = vpack.c.bf16 %v259, %v259
        %v272 = vpack.c.bf16 %v265, %v265
        %v273 = vpack.c.bf16 %v270, %v270
        %v274 = vld [vmem:[#allocation5] sm:$0xf]
        %s275 = scalar_lea.vmem [#allocation5], 4
        %v276 = vld [vmem:[%s275] sm:$0xf]
        %vm277 = vcmask 64512
        %v279 = vsel %vm277, %v276, 0
        %vm281 = vcmask 1043456
        %v283 = vsel %vm281, %v271, 0
        %285 = vmatprep.subr.bf16.mxu0 0
        %286 = vmatpush1.bf16.msra.mxu0 0
        %287 = vmatprep.subr.bf16.mxu0 0
        %288 = vmatpush1.bf16.msra.mxu0 0
        %289 = vmatprep.subr.bf16.mxu0 0
        %290 = vmatpush1.bf16.msra.mxu0 0
        %291 = vmatprep.subr.bf16.mxu0 0
        %292 = vmatpush1.bf16.msra.mxu0 0
        %293 = vmatprep.subr.bf16.mxu0 0
        %294 = vmatpush1.bf16.msra.mxu0 0
        %295 = vmatprep.subr.bf16.mxu0 0
        %296 = vmatpush1.bf16.msra.mxu0 0
        %297 = vmatprep.subr.bf16.mxu0 0
        %298 = vmatpush1.bf16.msra.mxu0 0
        %299 = vmatprep.subr.bf16.mxu0 0
        %300 = vmatpush1.bf16.msra.mxu0 %v283
        %301 = vmatprep.subr.bf16.mxu0 0
        %302 = vmatpush2.bf16.msra.mxu0 0
        %303 = vmatprep.subr.bf16.mxu0 0
        %304 = vmatpush2.bf16.msra.mxu0 0
        %305 = vmatprep.subr.bf16.mxu0 0
        %306 = vmatpush2.bf16.msra.mxu0 0
        %307 = vmatprep.subr.bf16.mxu0 0
        %308 = vmatpush2.bf16.msra.mxu0 0
        %309 = vmatprep.subr.bf16.mxu0 0
        %310 = vmatpush2.bf16.msra.mxu0 0
        %311 = vmatprep.subr.bf16.mxu0 0
        %312 = vmatpush2.bf16.msra.mxu0 0
        %313 = vmatprep.subr.bf16.mxu0 0
        %314 = vmatpush2.bf16.msra.mxu0 0
        %315 = vmatprep.subr.bf16.mxu0 0
        %316 = vmatpush2.bf16.msra.mxu0 0
        %317 = vmatprep.mubr.bf16.mxu0 0
        %318 = vmatmul.mubr.bf16.gmra.mxu0 %v279
        %v319 = vpop.f32.mrf.mxu0
        %v320 = vadd.f32 0.0, %v319
        %v321 = vpop.f32.mrf.mxu0
        %v322 = vpop.f32.mrf.mxu0
        %v323 = vpop.f32.mrf.mxu0
        %324 = vdwg.mxu0
        %v326 = vsel %vm277, %v274, 0
        %v329 = vsel %vm281, %v272, 0
        %331 = vmatprep.subr.bf16.mxu0 0
        %332 = vmatpush1.bf16.msra.mxu0 0
        %333 = vmatprep.subr.bf16.mxu0 0
        %334 = vmatpush1.bf16.msra.mxu0 0
        %335 = vmatprep.subr.bf16.mxu0 0
        %336 = vmatpush1.bf16.msra.mxu0 0
        %337 = vmatprep.subr.bf16.mxu0 0
        %338 = vmatpush1.bf16.msra.mxu0 0
        %339 = vmatprep.subr.bf16.mxu0 0
        %340 = vmatpush1.bf16.msra.mxu0 0
        %341 = vmatprep.subr.bf16.mxu0 0
        %342 = vmatpush1.bf16.msra.mxu0 0
        %343 = vmatprep.subr.bf16.mxu0 0
        %344 = vmatpush1.bf16.msra.mxu0 0
        %345 = vmatprep.subr.bf16.mxu0 0
        %346 = vmatpush1.bf16.msra.mxu0 %v329
        %347 = vmatprep.subr.bf16.mxu0 0
        %348 = vmatpush2.bf16.msra.mxu0 0
        %349 = vmatprep.subr.bf16.mxu0 0
        %350 = vmatpush2.bf16.msra.mxu0 0
        %351 = vmatprep.subr.bf16.mxu0 0
        %352 = vmatpush2.bf16.msra.mxu0 0
        %353 = vmatprep.subr.bf16.mxu0 0
        %354 = vmatpush2.bf16.msra.mxu0 0
        %355 = vmatprep.subr.bf16.mxu0 0
        %356 = vmatpush2.bf16.msra.mxu0 0
        %357 = vmatprep.subr.bf16.mxu0 0
        %358 = vmatpush2.bf16.msra.mxu0 0
        %359 = vmatprep.subr.bf16.mxu0 0
        %360 = vmatpush2.bf16.msra.mxu0 0
        %361 = vmatprep.subr.bf16.mxu0 0
        %362 = vmatpush2.bf16.msra.mxu0 0
        %363 = vmatprep.mubr.bf16.mxu0 0
        %364 = vmatmul.mubr.bf16.gmra.mxu0 %v326
        %v365 = vpop.f32.mrf.mxu0
        %v366 = vadd.f32 %v320, %v365
        %v367 = vpop.f32.mrf.mxu0
        %v368 = vpop.f32.mrf.mxu0
        %v369 = vpop.f32.mrf.mxu0
        %370 = vdwg.mxu0
        %s371 = scalar_lea.vmem [#allocation5], 8
        %v372 = vld [vmem:[%s371] sm:$0xf]
        %s373 = scalar_lea.vmem [#allocation5], 12
        %v374 = vld [vmem:[%s373] sm:$0xf]
        %v376 = vsel %vm277, %v374, 0
        %v379 = vsel %vm281, %v273, 0
        %381 = vmatprep.subr.bf16.mxu0 0
        %382 = vmatpush1.bf16.msra.mxu0 0
        %383 = vmatprep.subr.bf16.mxu0 0
        %384 = vmatpush1.bf16.msra.mxu0 0
        %385 = vmatprep.subr.bf16.mxu0 0
        %386 = vmatpush1.bf16.msra.mxu0 0
        %387 = vmatprep.subr.bf16.mxu0 0
        %388 = vmatpush1.bf16.msra.mxu0 0
        %389 = vmatprep.subr.bf16.mxu0 0
        %390 = vmatpush1.bf16.msra.mxu0 0
        %391 = vmatprep.subr.bf16.mxu0 0
        %392 = vmatpush1.bf16.msra.mxu0 0
        %393 = vmatprep.subr.bf16.mxu0 0
        %394 = vmatpush1.bf16.msra.mxu0 0
        %395 = vmatprep.subr.bf16.mxu0 0
        %396 = vmatpush1.bf16.msra.mxu0 %v379
        %397 = vmatprep.subr.bf16.mxu0 0
        %398 = vmatpush2.bf16.msra.mxu0 0
        %399 = vmatprep.subr.bf16.mxu0 0
        %400 = vmatpush2.bf16.msra.mxu0 0
        %401 = vmatprep.subr.bf16.mxu0 0
        %402 = vmatpush2.bf16.msra.mxu0 0
        %403 = vmatprep.subr.bf16.mxu0 0
        %404 = vmatpush2.bf16.msra.mxu0 0
        %405 = vmatprep.subr.bf16.mxu0 0
        %406 = vmatpush2.bf16.msra.mxu0 0
        %407 = vmatprep.subr.bf16.mxu0 0
        %408 = vmatpush2.bf16.msra.mxu0 0
        %409 = vmatprep.subr.bf16.mxu0 0
        %410 = vmatpush2.bf16.msra.mxu0 0
        %411 = vmatprep.subr.bf16.mxu0 0
        %412 = vmatpush2.bf16.msra.mxu0 0
        %413 = vmatprep.mubr.bf16.mxu0 0
        %414 = vmatmul.mubr.bf16.gmra.mxu0 %v376
        %v415 = vpop.f32.mrf.mxu0
        %v416 = vadd.f32 0.0, %v415
        %v417 = vpop.f32.mrf.mxu0
        %v418 = vpop.f32.mrf.mxu0
        %v419 = vpop.f32.mrf.mxu0
        %420 = vdwg.mxu0
        %v422 = vsel %vm277, %v372, 0
        %424 = vmatprep.subr.bf16.mxu0 0
        %425 = vmatpush1.bf16.msra.mxu0 0
        %426 = vmatprep.subr.bf16.mxu0 0
        %427 = vmatpush1.bf16.msra.mxu0 0
        %428 = vmatprep.subr.bf16.mxu0 0
        %429 = vmatpush1.bf16.msra.mxu0 0
        %430 = vmatprep.subr.bf16.mxu0 0
        %431 = vmatpush1.bf16.msra.mxu0 0
        %432 = vmatprep.subr.bf16.mxu0 0
        %433 = vmatpush1.bf16.msra.mxu0 0
        %434 = vmatprep.subr.bf16.mxu0 0
        %435 = vmatpush1.bf16.msra.mxu0 0
        %436 = vmatprep.subr.bf16.mxu0 0
        %437 = vmatpush1.bf16.msra.mxu0 0
        %438 = vmatprep.subr.bf16.mxu0 0
        %439 = vmatpush1.bf16.msra.mxu0 %v283
        %440 = vmatprep.subr.bf16.mxu0 0
        %441 = vmatpush2.bf16.msra.mxu0 0
        %442 = vmatprep.subr.bf16.mxu0 0
        %443 = vmatpush2.bf16.msra.mxu0 0
        %444 = vmatprep.subr.bf16.mxu0 0
        %445 = vmatpush2.bf16.msra.mxu0 0
        %446 = vmatprep.subr.bf16.mxu0 0
        %447 = vmatpush2.bf16.msra.mxu0 0
        %448 = vmatprep.subr.bf16.mxu0 0
        %449 = vmatpush2.bf16.msra.mxu0 0
        %450 = vmatprep.subr.bf16.mxu0 0
        %451 = vmatpush2.bf16.msra.mxu0 0
        %452 = vmatprep.subr.bf16.mxu0 0
        %453 = vmatpush2.bf16.msra.mxu0 0
        %454 = vmatprep.subr.bf16.mxu0 0
        %455 = vmatpush2.bf16.msra.mxu0 0
        %456 = vmatprep.mubr.bf16.mxu0 0
        %457 = vmatmul.mubr.bf16.gmra.mxu0 %v422
        %v458 = vpop.f32.mrf.mxu0
        %v459 = vadd.f32 %v416, %v458
        %v460 = vpop.f32.mrf.mxu0
        %v461 = vpop.f32.mrf.mxu0
        %v462 = vpop.f32.mrf.mxu0
        %463 = vdwg.mxu0
        %v464 = vld [vmem:[%s2] sm:$0xff]
        %466 = vset.pattern.permute.xlu0 0
        %467 = vperm.xlu0 %466, %v464
        %v468 = vpop.permute.xlu0 %467
        %v470 = vadd.f32 %v366, %v468
        %vm471 = vcmask 130048
        %472 = vst.msk [vmem:[%s250] sm:$0xff] %vm471, %v470
        %v473 = vadd.f32 %v459, %v468
        %474 = vst.msk [vmem:[%s257] sm:$0xff] %vm471, %v473
        %s475 = sand.u32 %s118, 1
        %s476 = scalar_lea.sflag [#allocation4], %s475
        %s477 = sand.u32 %s118, 1
        %s478 = smul.addr %s477, 8
        %s479 = scalar_lea.vmem [#allocation7], %s478
        %s480 = sand.u32 %s146, 1
        %s481 = scalar_lea.sflag [#allocation9], %s480
        %s482 = sand.u32 %s146, 1
        %s483 = smul.addr %s482, 8
        %s484 = scalar_lea.vmem [#allocation8], %s483
        // Predicated region
        $region41: #{tpu_custom_call.1} parent=31 // pred_check
          %p485 = pneg %p128
        $region42: #{tpu_custom_call.1} parent=31 // pred_check_branch
          %487 = sbr.rel (%p485) target = $region44
        $region43: #{tpu_custom_call.1} parent=31 // pred_region
          %s489 = ssub.s32 128, 128
          %490 = vsyncadd %s476, %s489
          %s491 = sadd.s32 %s31, %s30
          %s492 = smul.addr %s491, 128
          %s493 = scalar_lea.hbm %s3, %s492
          %s495 = sshll.u32 %s479, 4
          %s496 = int_to_ptr.vmem [resolvable:$true] %s495
          %498 = dma.vmem_to_hbm [thread:$0]  %s496, 128, %s493, %s476
        $region44: #{tpu_custom_call.1} parent=31 // pred_fallthru
          _
        // Predicated region
        $region45: #{tpu_custom_call.1} parent=31 // pred_check
          %p499 = pneg %p156
        $region46: #{tpu_custom_call.1} parent=31 // pred_check_branch
          %501 = sbr.rel (%p499) target = $region48
        $region47: #{tpu_custom_call.1} parent=31 // pred_region
          %s503 = ssub.s32 128, 128
          %504 = vsyncadd %s481, %s503
          %s505 = sadd.s32 %s31, %s30
          %s506 = smul.addr %s505, 128
          %s507 = scalar_lea.hbm %s4, %s506
          %s509 = sshll.u32 %s484, 4
          %s510 = int_to_ptr.vmem [resolvable:$true] %s509
          %512 = dma.vmem_to_hbm [thread:$0]  %s510, 128, %s507, %s481
        $region48: #{tpu_custom_call.1} parent=31 // pred_fallthru
          _
      $region32: #{tpu_custom_call.1} parent=5 // pred_fallthru
        _
      %p513 = scmp.le.s32.totalorder 2, %s21
      // Predicated region
      $region49: #{tpu_custom_call.1} parent=5 // pred_check
        %p514 = pneg %p513
      $region50: #{tpu_custom_call.1} parent=5 // pred_check_branch
        %516 = sbr.rel (%p514) target = $region52
      $region51: #{tpu_custom_call.1} parent=5 // pred_region
        %s517 = ssub.s32 %s21, 2
        // Predicated region
        $region53: #{tpu_custom_call.1} parent=51 // pred_check
          %p518 = pneg %p134
        $region54: #{tpu_custom_call.1} parent=51 // pred_check_branch
          %520 = sbr.rel (%p518) target = $region56
        $region55: #{tpu_custom_call.1} parent=51 // pred_region
          %s521 = sand.u32 %s119, 1
          %s522 = scalar_lea.sflag [#allocation4], %s521
          %s523 = sand.u32 %s119, 1
          %s524 = smul.addr %s523, 8
          %s525 = scalar_lea.vmem [#allocation7], %s524
          %526 = dma.done %s522, 128
        $region56: #{tpu_custom_call.1} parent=51 // pred_fallthru
          _
        // Predicated region
        $region57: #{tpu_custom_call.1} parent=51 // pred_check
          %p527 = pneg %p162
        $region58: #{tpu_custom_call.1} parent=51 // pred_check_branch
          %529 = sbr.rel (%p527) target = $region60
        $region59: #{tpu_custom_call.1} parent=51 // pred_region
          %s530 = sand.u32 %s147, 1
          %s531 = scalar_lea.sflag [#allocation9], %s530
          %s532 = sand.u32 %s147, 1
          %s533 = smul.addr %s532, 8
          %s534 = scalar_lea.vmem [#allocation8], %s533
          %535 = dma.done %s531, 128
        $region60: #{tpu_custom_call.1} parent=51 // pred_fallthru
          _
      $region52: #{tpu_custom_call.1} parent=5 // pred_fallthru
        _
    $region6: #{tpu_custom_call.1} parent=1 // loop_footer
      %s25 = sadd.s32 1, %s21
    $region7: #{tpu_custom_call.1} parent=1 // loop_footer_branch
      %20 = sbr.rel target = $region3
    $region8: #{tpu_custom_call.1} parent=1 // loop_exit
      _
    %536 = vsyncpa [#allocation3], 1
    %s537 = scalar_lea.sflag [#allocation3], 1
    %538 = vsyncpa %s537, 1
    %539 = vsyncpa [#allocation6], 1
    %540 = vsyncpa [#allocation4], 1
    %s541 = scalar_lea.sflag [#allocation4], 1
    %542 = vsyncpa %s541, 1
    %543 = vsyncpa [#allocation9], 1
    %s544 = scalar_lea.sflag [#allocation9], 1
    %545 = vsyncpa %s544, 1

</llo_original>
